<compile_context>
chip_gen: v7x
topology: tpu7x:2x2x1
jax: 0.10.0
libtpu: 0.0.40
codegen_flags: <defaults>
</compile_context>

<pallas_src>
import jax
import jax.numpy as jnp
from jax.experimental import pallas as pl
from jax.experimental.pallas import tpu as pltpu


def _round_up(a, b):
    return ((a + b - 1) // b) * b


def _conv_stats_kernel(w_ref, p_ref, y_ref, sum_ref, ssq_ref):
    # w_ref: (Cout, Kdim) bf16   p_ref: (Kdim, TM) bf16
    i = pl.program_id(0)
    y = jnp.dot(w_ref[...], p_ref[...],
                preferred_element_type=jnp.float32)        # (Cout, TM) f32
    y_ref[...] = y.astype(jnp.bfloat16)                    # lane-dense store

    @pl.when(i == 0)
    def _():
        sum_ref[...] = jnp.zeros_like(sum_ref)
        ssq_ref[...] = jnp.zeros_like(ssq_ref)

    sum_ref[...] += jnp.sum(y, axis=1, keepdims=True)      # (Cout, 1)
    ssq_ref[...] += jnp.sum(y * y, axis=1, keepdims=True)  # (Cout, 1)


def _bn_prelu_kernel(y_ref, scale_ref, shift_ref, alpha_ref, o_ref):
    # y_ref: (Cout, TM) bf16; scale/shift/alpha: (Cout, 1) f32 (lane-broadcast)
    z = y_ref[...].astype(jnp.float32) * scale_ref[...] + shift_ref[...]
    o_ref[...] = jnp.where(z > 0, z, z * alpha_ref[...])


def conv_block_forward(x_nchw, weight, gamma, beta, alpha, *,
                       k, s, p, dw=False, linear=False, eps=1e-5):
    N, Cin, H, W = x_nchw.shape
    Cout = weight.shape[0]
    OH = (H + 2 * p - k) // s + 1
    OW = (W + 2 * p - k) // s + 1
    M = N * OH * OW
    Kdim = k * k * Cin

    # lane tile: as large as possible (<=1024) while keeping zero/low padding
    TM = min(1024, _round_up(M, 128))
    Mp = _round_up(M, TM)
    grid = (Mp // TM,)

    # ---- transposed im2col P_T (Kdim, M): rows = tap-major, channel-minor ----
    xp = jnp.pad(x_nchw, ((0, 0), (0, 0), (p, p), (p, p)))
    rows = []
    for kh in range(k):
        for kw in range(k):
            sl = xp[:, :, kh:kh + (OH - 1) * s + 1:s,
                    kw:kw + (OW - 1) * s + 1:s]             # (N, Cin, OH, OW)
            rows.append(jnp.transpose(sl, (1, 0, 2, 3)).reshape(Cin, M))
    patches_t = jnp.concatenate(rows, axis=0)               # (Kdim, M)
    patches_t = jnp.pad(patches_t, ((0, 0), (0, Mp - M))).astype(jnp.bfloat16)

    # ---- transposed weight matrix W_T (Cout, Kdim), same tap/channel order ----
    if dw:
        # grouped conv (groups = Cin) -> exact block-diagonal weight matrix
        mult = Cout // Cin
        o_idx = jnp.arange(Cout)
        c_of_o = o_idx // mult
        w_t = jnp.zeros((Cout, k * k, Cin), jnp.float32)
        w_t = w_t.at[o_idx, :, c_of_o].set(weight[:, 0, :, :].reshape(Cout, k * k))
        wmat_t = w_t.reshape(Cout, Kdim)
    else:
        wmat_t = jnp.transpose(weight, (0, 2, 3, 1)).reshape(Cout, Kdim)
    wmat_t = wmat_t.astype(jnp.bfloat16)

    # ---- kernel A: conv matmul (MXU, bf16 in / f32 acc) + BN statistics ----
    y, csum, cssq = pl.pallas_call(
        _conv_stats_kernel,
        out_shape=(jax.ShapeDtypeStruct((Cout, Mp), jnp.bfloat16),
                   jax.ShapeDtypeStruct((Cout, 1), jnp.float32),
                   jax.ShapeDtypeStruct((Cout, 1), jnp.float32)),
        grid_spec=pltpu.PrefetchScalarGridSpec(
            num_scalar_prefetch=0,
            grid=grid,
            in_specs=[pl.BlockSpec((Cout, Kdim), lambda i: (0, 0)),
                      pl.BlockSpec((Kdim, TM), lambda i: (0, i))],
            out_specs=[pl.BlockSpec((Cout, TM), lambda i: (0, i)),
                       pl.BlockSpec((Cout, 1), lambda i: (0, 0)),
                       pl.BlockSpec((Cout, 1), lambda i: (0, 0))]),
        compiler_params=pltpu.CompilerParams(
            dimension_semantics=("arbitrary",),
            vmem_limit_bytes=32 * 1024 * 1024),
    )(wmat_t, patches_t)

    # tiny (Cout,)-sized glue: training-mode (biased) batch statistics.
    # padded columns are zero -> contribute nothing to sum/ssq; divide by real M.
    mean = csum / M                                          # (Cout, 1)
    var = jnp.maximum(cssq / M - mean * mean, 0.0)           # clamp >= 0
    inv_std = jax.lax.rsqrt(var + eps)
    scale = gamma.reshape(Cout, 1) * inv_std                 # (Cout, 1)
    shift = beta.reshape(Cout, 1) - mean * scale             # (Cout, 1)
    alpha2 = (jnp.ones((Cout, 1), jnp.float32) if linear
              else alpha.reshape(Cout, 1).astype(jnp.float32))

    # ---- kernel B: fused BN normalize + PReLU (lane-dense, parallel grid) ----
    out_t = pl.pallas_call(
        _bn_prelu_kernel,
        out_shape=jax.ShapeDtypeStruct((Cout, Mp), jnp.float32),
        grid_spec=pltpu.PrefetchScalarGridSpec(
            num_scalar_prefetch=0,
            grid=grid,
            in_specs=[pl.BlockSpec((Cout, TM), lambda i: (0, i)),
                      pl.BlockSpec((Cout, 1), lambda i: (0, 0)),
                      pl.BlockSpec((Cout, 1), lambda i: (0, 0)),
                      pl.BlockSpec((Cout, 1), lambda i: (0, 0))],
            out_specs=pl.BlockSpec((Cout, TM), lambda i: (0, i))),
        compiler_params=pltpu.CompilerParams(
            dimension_semantics=("parallel",),
            vmem_limit_bytes=32 * 1024 * 1024),
    )(y, scale, shift, alpha2)

    out = out_t[:, :M].reshape(Cout, N, OH, OW)
    return jnp.transpose(out, (1, 0, 2, 3))                  # NCHW


def _reference(x, weight, gamma, beta, alpha, *, k, s, p, linear, eps=1e-5):
    y = jax.lax.conv_general_dilated(
        x, weight, window_strides=(s, s), padding=[(p, p), (p, p)],
        dimension_numbers=("NCHW", "OIHW", "NCHW"))
    mean = jnp.mean(y, axis=(0, 2, 3), keepdims=True)
    var = jnp.mean((y - mean) ** 2, axis=(0, 2, 3), keepdims=True)
    z = (y - mean) / jnp.sqrt(var + eps)
    z = z * gamma.reshape(1, -1, 1, 1) + beta.reshape(1, -1, 1, 1)
    if linear:
        return z
    a = alpha.reshape(1, -1, 1, 1)
    return jnp.where(z > 0, z, z * a)


if __name__ == "__main__":
    key = jax.random.PRNGKey(0)
    k1, k2, k3, k4 = jax.random.split(key, 4)

    # ConvBlock(inp=4, oup=8, k=3, s=1, p=1, dw=False, linear=False)
    N, Cin, H, W = 2, 4, 16, 16
    Cout, ksz, stride, pad = 8, 3, 1, 1

    x = jax.random.normal(k1, (N, Cin, H, W), jnp.float32)
    weight = 0.1 * jax.random.normal(k2, (Cout, Cin, ksz, ksz), jnp.float32)
    gamma = 1.0 + 0.1 * jax.random.normal(k3, (Cout,), jnp.float32)
    beta = 0.1 * jax.random.normal(k4, (Cout,), jnp.float32)
    alpha = jnp.full((Cout,), 0.25, jnp.float32)  # nn.PReLU default init

    out = conv_block_forward(x, weight, gamma, beta, alpha,
                             k=ksz, s=stride, p=pad, dw=False, linear=False)
    out = jax.block_until_ready(out)

    ref = _reference(x, weight, gamma, beta, alpha,
                     k=ksz, s=stride, p=pad, linear=False)
    assert out.shape == (N, Cout, H, W)
    # bf16 MXU inputs + bf16 intermediate (f32 accumulation) vs f32 reference
    assert jnp.allclose(out, ref, atol=4e-2, rtol=4e-2)

    print("KERNEL_OK")
</pallas_src>

<mosaic_0001>
module attributes {stable_mosaic.version = 11 : i64} {
  func.func @_conv_stats_kernel(%arg0: i32, %arg1: memref<8x36xbf16, #tpu.memory_space<vmem>>, %arg2: memref<36x512xbf16, #tpu.memory_space<vmem>>, %arg3: memref<8x512xbf16, #tpu.memory_space<vmem>>, %arg4: memref<8x1xf32, #tpu.memory_space<vmem>>, %arg5: memref<8x1xf32, #tpu.memory_space<vmem>>) attributes {dimension_semantics = [#tpu.dimension_semantics<arbitrary>], iteration_bounds = array<i64: 1>, scalar_prefetch = 0 : i64, scratch_operands = 0 : i64, tpu.core_type = #tpu.core_type<tc>, window_params = [{pipeline_mode = #tpu.pipeline_mode<synchronous>, transform_indices = @transform_0, window_bounds = array<i64: 8, 36>}, {transform_indices = @transform_1, window_bounds = array<i64: 36, 512>}, {transform_indices = @transform_2, window_bounds = array<i64: 8, 512>}, {pipeline_mode = #tpu.pipeline_mode<synchronous>, transform_indices = @transform_3, window_bounds = array<i64: 8, 1>}, {pipeline_mode = #tpu.pipeline_mode<synchronous>, transform_indices = @transform_4, window_bounds = array<i64: 8, 1>}]} {
    %c0 = arith.constant 0 : index
    %c0_0 = arith.constant 0 : index
    %0 = vector.load %arg1[%c0, %c0_0] : memref<8x36xbf16, #tpu.memory_space<vmem>>, vector<8x36xbf16>
    %c0_1 = arith.constant 0 : index
    %c0_2 = arith.constant 0 : index
    %1 = vector.load %arg2[%c0_1, %c0_2] : memref<36x512xbf16, #tpu.memory_space<vmem>>, vector<36x512xbf16>
    %cst = arith.constant dense<0.000000e+00> : vector<8x512xf32>
    %2 = tpu.matmul %0, %1, %cst {dimension_numbers = #tpu.dot_dimension_numbers<[1], [0], [0], [1], [0, 0, 1, 1], [], []>} : vector<8x36xbf16>, vector<36x512xbf16>, vector<8x512xf32> -> vector<8x512xf32>
    %3 = arith.truncf %2 : vector<8x512xf32> to vector<8x512xbf16>
    %c0_3 = arith.constant 0 : index
    %c0_4 = arith.constant 0 : index
    %4 = vector.load %arg3[%c0_3, %c0_4] : memref<8x512xbf16, #tpu.memory_space<vmem>>, vector<8x512xbf16>
    tpu.vector_store %arg3[%c0_3, %c0_4], %3 {strides = array<i32>} : memref<8x512xbf16, #tpu.memory_space<vmem>>, vector<8x512xbf16>,
    %c0_i32 = arith.constant 0 : i32
    %5 = arith.cmpi eq, %arg0, %c0_i32 : i32
    %6 = arith.extui %5 : i1 to i32
    %c0_i32_5 = arith.constant 0 : i32
    %7 = arith.cmpi ne, %6, %c0_i32_5 : i32
    scf.if %7 {
      %cst_16 = arith.constant 0.000000e+00 : f32
      %19 = vector.broadcast %cst_16 : f32 to vector<8x1xf32>
      %c0_17 = arith.constant 0 : index
      %c0_18 = arith.constant 0 : index
      %20 = vector.load %arg4[%c0_17, %c0_18] : memref<8x1xf32, #tpu.memory_space<vmem>>, vector<8x1xf32>
      tpu.vector_store %arg4[%c0_17, %c0_18], %19 {strides = array<i32>} : memref<8x1xf32, #tpu.memory_space<vmem>>, vector<8x1xf32>,
      %cst_19 = arith.constant 0.000000e+00 : f32
      %21 = vector.broadcast %cst_19 : f32 to vector<8x1xf32>
      %c0_20 = arith.constant 0 : index
      %c0_21 = arith.constant 0 : index
      %22 = vector.load %arg5[%c0_20, %c0_21] : memref<8x1xf32, #tpu.memory_space<vmem>>, vector<8x1xf32>
      tpu.vector_store %arg5[%c0_20, %c0_21], %21 {strides = array<i32>} : memref<8x1xf32, #tpu.memory_space<vmem>>, vector<8x1xf32>,
    } else {
    }
    %c0_6 = arith.constant 0 : index
    %c0_7 = arith.constant 0 : index
    %8 = vector.load %arg4[%c0_6, %c0_7] : memref<8x1xf32, #tpu.memory_space<vmem>>, vector<8x1xf32>
    %cst_8 = arith.constant dense<0.000000e+00> : vector<8xf32>
    %9 = vector.multi_reduction <add>, %2, %cst_8 [1] : vector<8x512xf32> to vector<8xf32>
    %10 = vector.shape_cast %9 : vector<8xf32> to vector<8x1xf32>
    %11 = arith.addf %8, %10 : vector<8x1xf32>
    %c0_9 = arith.constant 0 : index
    %c0_10 = arith.constant 0 : index
    %12 = vector.load %arg4[%c0_9, %c0_10] : memref<8x1xf32, #tpu.memory_space<vmem>>, vector<8x1xf32>
    tpu.vector_store %arg4[%c0_9, %c0_10], %11 {strides = array<i32>} : memref<8x1xf32, #tpu.memory_space<vmem>>, vector<8x1xf32>,
    %c0_11 = arith.constant 0 : index
    %c0_12 = arith.constant 0 : index
    %13 = vector.load %arg5[%c0_11, %c0_12] : memref<8x1xf32, #tpu.memory_space<vmem>>, vector<8x1xf32>
    %14 = arith.mulf %2, %2 : vector<8x512xf32>
    %cst_13 = arith.constant dense<0.000000e+00> : vector<8xf32>
    %15 = vector.multi_reduction <add>, %14, %cst_13 [1] : vector<8x512xf32> to vector<8xf32>
    %16 = vector.shape_cast %15 : vector<8xf32> to vector<8x1xf32>
    %17 = arith.addf %13, %16 : vector<8x1xf32>
    %c0_14 = arith.constant 0 : index
    %c0_15 = arith.constant 0 : index
    %18 = vector.load %arg5[%c0_14, %c0_15] : memref<8x1xf32, #tpu.memory_space<vmem>>, vector<8x1xf32>
    tpu.vector_store %arg5[%c0_14, %c0_15], %17 {strides = array<i32>} : memref<8x1xf32, #tpu.memory_space<vmem>>, vector<8x1xf32>,
    return
  }
  func.func @transform_0(%arg0: i32) -> (i32, i32) {
    %c0_i32 = arith.constant 0 : i32
    %c0_i32_0 = arith.constant 0 : i32
    %c0_i32_1 = arith.constant 0 : i32
    return %c0_i32, %c0_i32_0 : i32, i32
  }
  func.func @transform_1(%arg0: i32) -> (i32, i32) {
    %c0_i32 = arith.constant 0 : i32
    %c0_i32_0 = arith.constant 0 : i32
    return %c0_i32, %arg0 : i32, i32
  }
  func.func @transform_2(%arg0: i32) -> (i32, i32) {
    %c0_i32 = arith.constant 0 : i32
    %c0_i32_0 = arith.constant 0 : i32
    return %c0_i32, %arg0 : i32, i32
  }
  func.func @transform_3(%arg0: i32) -> (i32, i32) {
    %c0_i32 = arith.constant 0 : i32
    %c0_i32_0 = arith.constant 0 : i32
    %c0_i32_1 = arith.constant 0 : i32
    return %c0_i32, %c0_i32_0 : i32, i32
  }
  func.func @transform_4(%arg0: i32) -> (i32, i32) {
    %c0_i32 = arith.constant 0 : i32
    %c0_i32_0 = arith.constant 0 : i32
    %c0_i32_1 = arith.constant 0 : i32
    return %c0_i32, %c0_i32_0 : i32, i32
  }
}

</mosaic_0001>

<llo_original>
// kernel: tpu_custom_call.1
$region0: #{tpu_custom_call.1}
  #allocation0 [shape = 'u32[]', space=smem, size = 0x4, offset = 0x4, fixed_abs, tag = 'smem constant byte address 0x4 - core index']
  #allocation1 [shape = 'u32[144,128]{1,0:T(1,128)}', space=vmem, size = 0x12000, scoped, tag = 'internal scratch']
  %s0 = inlined_call_operand.hbm [shape: bf16[8,36], index: 0, kind: input, shape index: {}]
  %s1 = inlined_call_operand.hbm [shape: bf16[36,512], index: 1, kind: input, shape index: {}]
  %s2 = inlined_call_operand.hbm [shape: bf16[8,512], index: 2, kind: output, shape index: {0}]
  %s3 = inlined_call_operand.vmem [shape: f32[8,1], index: 3, kind: output, shape index: {1}]
  %s4 = inlined_call_operand.vmem [shape: f32[8,1], index: 4, kind: output, shape index: {2}]
  %5 = xla_tuple %s2, %s3, %s4
  %s6 = sld [smem:[#allocation0]]
  $region46: #{tpu_custom_call.1} parent=0
    _
  %s8 = ssub.s32 1, %s6
  %s9 = scalar_select 0, %s8, %s6
  $region1: #{tpu_custom_call.1} parent=0
    #allocation2 [shape = 'u8[2048]{0}', space=vmem, size = 0x800, scoped, tag = 'input window, operand 0, single buffered']
    #allocation3 [shape = 's32[1]{0}', space=sflag, size = 0x4, scoped, tag = 'scoped memory for tpu_custom_call.1']
    #allocation4 [shape = 's32[1]{0}', space=sflag, size = 0x4, scoped, tag = 'scoped memory for tpu_custom_call.1']
    #allocation5 [shape = 'u8[40960]{0}', space=vmem, size = 0xa000, scoped, tag = 'input window, operand 1, single buffered']
    #allocation6 [shape = 's32[1]{0}', space=sflag, size = 0x4, scoped, tag = 'scoped memory for tpu_custom_call.1']
    #allocation7 [shape = 'u8[8192]{0}', space=vmem, size = 0x2000, scoped, tag = 'output window, operand 0, single buffered']
    %10 = vsyncpa [#allocation3], 0
    %11 = vsyncpa [#allocation6], 0
    %12 = vsyncpa [#allocation4], 0
    // Predicated region
    $region2: #{tpu_custom_call.1} parent=1 // pred_check
      _
    $region3: #{tpu_custom_call.1} parent=1 // pred_check_branch
      %14 = sbr.rel (0) target = $region5
    $region4: #{tpu_custom_call.1} parent=1 // pred_region
      %s16 = ssub.s32 64, 64
      %17 = vsyncadd [#allocation3], %s16
      %s19 = sshll.u32 [#allocation2], 4
      %s20 = int_to_ptr.vmem [resolvable:$true] %s19
      %22 = dma.hbm_to_vmem [thread:$0]  %s0, 64, %s20, [#allocation3]
    $region5: #{tpu_custom_call.1} parent=1 // pred_fallthru
      _
    // Predicated region
    $region6: #{tpu_custom_call.1} parent=1 // pred_check
      _
    $region7: #{tpu_custom_call.1} parent=1 // pred_check_branch
      %24 = sbr.rel (0) target = $region9
    $region8: #{tpu_custom_call.1} parent=1 // pred_region
      %s26 = ssub.s32 1280, 1280
      %27 = vsyncadd [#allocation6], %s26
      %s28 = sshll.u32 [#allocation5], 4
      %s29 = int_to_ptr.vmem [resolvable:$true] %s28
      %34 = dma.hbm_to_vmem [thread:$0]  %s1, 1280, %s29, [#allocation6], 256, 256, 16
    $region9: #{tpu_custom_call.1} parent=1 // pred_fallthru
      _
    // Predicated region
    $region10: #{tpu_custom_call.1} parent=1 // pred_check
      _
    $region11: #{tpu_custom_call.1} parent=1 // pred_check_branch
      %36 = sbr.rel (0) target = $region13
    $region12: #{tpu_custom_call.1} parent=1 // pred_region
      %37 = dma.done [#allocation3], 64
    $region13: #{tpu_custom_call.1} parent=1 // pred_fallthru
      _
    // Predicated region
    $region14: #{tpu_custom_call.1} parent=1 // pred_check
      _
    $region15: #{tpu_custom_call.1} parent=1 // pred_check_branch
      %39 = sbr.rel (0) target = $region17
    $region16: #{tpu_custom_call.1} parent=1 // pred_region
      %40 = dma.done [#allocation6], 1280
    $region17: #{tpu_custom_call.1} parent=1 // pred_fallthru
      _
    %v42 = vld [vmem:[#allocation2] sm:$0xf]
    %v43 = vld [vmem:[#allocation5] sm:$0xff]
    %v44 = vld [vmem:[#allocation5 + $0x8] sm:$0xff]
    %v45 = vld [vmem:[#allocation5 + $0x10] sm:$0xff]
    %v46 = vld [vmem:[#allocation5 + $0x18] sm:$0xff]
    %v47 = vld [vmem:[#allocation5 + $0x20] sm:$0xff]
    %v48 = vld [vmem:[#allocation5 + $0x28] sm:$0xff]
    %v49 = vld [vmem:[#allocation5 + $0x30] sm:$0xff]
    %v50 = vld [vmem:[#allocation5 + $0x38] sm:$0xff]
    %v51 = vld [vmem:[#allocation5 + $0x40] sm:$0x33]
    %v52 = vld [vmem:[#allocation5 + $0x48] sm:$0x33]
    %v63 = vunpack.c.l.b16 %v43
    %v64 = vunpack.c.h.b16 %v43
    %v65 = vunpack.c.l.b16 %v44
    %v66 = vunpack.c.h.b16 %v44
    %v67 = vunpack.c.l.b16 %v45
    %v68 = vunpack.c.h.b16 %v45
    %v69 = vunpack.c.l.b16 %v46
    %v70 = vunpack.c.h.b16 %v46
    %v71 = vunpack.c.l.b16 %v47
    %v72 = vunpack.c.h.b16 %v47
    %v73 = vunpack.c.l.b16 %v48
    %v74 = vunpack.c.h.b16 %v48
    %v75 = vunpack.c.l.b16 %v49
    %v76 = vunpack.c.h.b16 %v49
    %v77 = vunpack.c.l.b16 %v50
    %v78 = vunpack.c.h.b16 %v50
    %v79 = vunpack.c.l.b16 %v51
    %v80 = vunpack.c.h.b16 %v51
    %v81 = vunpack.c.l.b16 %v52
    %v82 = vunpack.c.h.b16 %v52
    %v83 = vpack.c.b16 %v67, %v63
    %v84 = vpack.c.b16 %v68, %v64
    %v85 = vpack.c.b16 %v69, %v65
    %v86 = vpack.c.b16 %v70, %v66
    %v87 = vpack.c.b16 %v75, %v71
    %v88 = vpack.c.b16 %v76, %v72
    %v89 = vpack.c.b16 %v77, %v73
    %v90 = vpack.c.b16 %v78, %v74
    %v91 = vpack.c.b16 %v79, %v79
    %v92 = vpack.c.b16 %v80, %v80
    %v93 = vpack.c.b16 %v81, %v81
    %v94 = vpack.c.b16 %v82, %v82
    %vm103 = vcmask 293888
    %v105 = vsel %vm103, %v42, 0
    %vm107 = vcmask 1041408
    %v109 = vsel %vm107, %v91, 0
    %v112 = vsel %vm107, %v92, 0
    %v115 = vsel %vm107, %v93, 0
    %v118 = vsel %vm107, %v94, 0
    %120 = vmatprep.subr.bf16.mxu0 %v84
    %121 = vmatpush1.bf16.msra.mxu0 %v83
    %122 = vmatprep.subr.bf16.mxu0 %v88
    %123 = vmatpush1.bf16.msra.mxu0 %v87
    %124 = vmatprep.subr.bf16.mxu0 %v112
    %125 = vmatpush1.bf16.msra.mxu0 %v109
    %126 = vmatprep.subr.bf16.mxu0 0
    %127 = vmatpush1.bf16.msra.mxu0 0
    %128 = vmatprep.subr.bf16.mxu0 0
    %129 = vmatpush1.bf16.msra.mxu0 0
    %130 = vmatprep.subr.bf16.mxu0 0
    %131 = vmatpush1.bf16.msra.mxu0 0
    %132 = vmatprep.subr.bf16.mxu0 0
    %133 = vmatpush1.bf16.msra.mxu0 0
    %134 = vmatprep.subr.bf16.mxu0 0
    %135 = vmatpush1.bf16.msra.mxu0 0
    %136 = vmatprep.subr.bf16.mxu0 0
    %137 = vmatpush1.bf16.msra.mxu0 0
    %138 = vmatprep.subr.bf16.mxu0 0
    %139 = vmatpush1.bf16.msra.mxu0 0
    %140 = vmatprep.subr.bf16.mxu0 0
    %141 = vmatpush1.bf16.msra.mxu0 0
    %142 = vmatprep.subr.bf16.mxu0 0
    %143 = vmatpush1.bf16.msra.mxu0 0
    %144 = vmatprep.subr.bf16.mxu0 0
    %145 = vmatpush1.bf16.msra.mxu0 0
    %146 = vmatprep.subr.bf16.mxu0 0
    %147 = vmatpush1.bf16.msra.mxu0 0
    %148 = vmatprep.subr.bf16.mxu0 0
    %149 = vmatpush1.bf16.msra.mxu0 0
    %150 = vmatprep.subr.bf16.mxu0 0
    %151 = vmatpush1.bf16.msra.mxu0 0
    %152 = vmatprep.mubr.bf16.mxu0 0
    %153 = vmatmul.mubr.bf16.gmra.mrb[0].mxu0 %v105
    %v154 = vpop.f32.mrb[0].mxu0
    %v155 = vadd.f32 0.0, %v154
    %v156 = vpop.f32.mrb[0].mxu0
    %v157 = vadd.f32 0.0, %v156
    %v158 = vpop.f32.mrb[0].mxu0
    %v159 = vpop.f32.mrb[0].mxu0
    %160 = vdwg.mxu0
    %161 = vmatprep.subr.bf16.mxu0 %v86
    %162 = vmatpush1.bf16.msra.mxu0 %v85
    %163 = vmatprep.subr.bf16.mxu0 %v90
    %164 = vmatpush1.bf16.msra.mxu0 %v89
    %165 = vmatprep.subr.bf16.mxu0 %v118
    %166 = vmatpush1.bf16.msra.mxu0 %v115
    %167 = vmatprep.subr.bf16.mxu0 0
    %168 = vmatpush1.bf16.msra.mxu0 0
    %169 = vmatprep.subr.bf16.mxu0 0
    %170 = vmatpush1.bf16.msra.mxu0 0
    %171 = vmatprep.subr.bf16.mxu0 0
    %172 = vmatpush1.bf16.msra.mxu0 0
    %173 = vmatprep.subr.bf16.mxu0 0
    %174 = vmatpush1.bf16.msra.mxu0 0
    %175 = vmatprep.subr.bf16.mxu0 0
    %176 = vmatpush1.bf16.msra.mxu0 0
    %177 = vmatprep.subr.bf16.mxu0 0
    %178 = vmatpush1.bf16.msra.mxu0 0
    %179 = vmatprep.subr.bf16.mxu0 0
    %180 = vmatpush1.bf16.msra.mxu0 0
    %181 = vmatprep.subr.bf16.mxu0 0
    %182 = vmatpush1.bf16.msra.mxu0 0
    %183 = vmatprep.subr.bf16.mxu0 0
    %184 = vmatpush1.bf16.msra.mxu0 0
    %185 = vmatprep.subr.bf16.mxu0 0
    %186 = vmatpush1.bf16.msra.mxu0 0
    %187 = vmatprep.subr.bf16.mxu0 0
    %188 = vmatpush1.bf16.msra.mxu0 0
    %189 = vmatprep.subr.bf16.mxu0 0
    %190 = vmatpush1.bf16.msra.mxu0 0
    %191 = vmatprep.subr.bf16.mxu0 0
    %192 = vmatpush1.bf16.msra.mxu0 0
    %193 = vmatprep.mubr.bf16.mxu0 0
    %194 = vmatmul.mubr.bf16.gmra.mrb[0].mxu0 %v105
    %v195 = vpop.f32.mrb[0].mxu0
    %v196 = vadd.f32 0.0, %v195
    %v197 = vpop.f32.mrb[0].mxu0
    %v198 = vadd.f32 0.0, %v197
    %v199 = vpop.f32.mrb[0].mxu0
    %v200 = vpop.f32.mrb[0].mxu0
    %201 = vdwg.mxu0
    %v202 = vpack.c.bf16 %v155, %v155
    %v203 = vpack.c.bf16 %v157, %v157
    %v204 = vpack.c.bf16 %v196, %v196
    %v205 = vpack.c.bf16 %v198, %v198
    %v210 = vunpack.c.l.b16 %v202
    %v211 = vunpack.c.l.b16 %v203
    %v212 = vunpack.c.l.b16 %v204
    %v213 = vunpack.c.l.b16 %v205
    %v214 = vpack.c.b16 %v211, %v210
    %v215 = vpack.c.b16 %v213, %v212
    %218 = vst [vmem:[#allocation7] sm:$0xff] %v214
    %219 = vst [vmem:[#allocation7 + $0x8] sm:$0xff] %v215
    %p220 = scmp.eq.s32.totalorder 0, 0
    // Predicated region
    $region18: #{tpu_custom_call.1} parent=1 // pred_check
      %p221 = pneg %p220
    $region19: #{tpu_custom_call.1} parent=1 // pred_check_branch
      %223 = sbr.rel (%p221) target = $region21
    $region20: #{tpu_custom_call.1} parent=1 // pred_region
      %vm224 = vcmask 7168
      %225 = vst.msk [vmem:[%s3] sm:$0xff] %vm224, 0.0
      %226 = vst.msk [vmem:[%s4] sm:$0xff] %vm224, 0.0
    $region21: #{tpu_custom_call.1} parent=1 // pred_fallthru
      _
    %v227 = vld [vmem:[%s3] sm:$0xff]
    %v228 = vadd.f32 %v155, %v157
    %v229 = vadd.f32 %v228, %v196
    %v230 = vadd.f32 %v229, %v198
    %231 = vadd.xlane.f32.xlu0 %v230
    %v232 = vpop.xlane.xlu0 %231
    %v233 = vadd.f32 %v227, %v232
    %vm234 = vcmask 7168
    %235 = vst.msk [vmem:[%s3] sm:$0xff] %vm234, %v233
    %v236 = vld [vmem:[%s4] sm:$0xff]
    %v237 = vmul.f32 %v155, %v155
    %v238 = vmul.f32 %v157, %v157
    %v239 = vmul.f32 %v196, %v196
    %v240 = vmul.f32 %v198, %v198
    %v241 = vadd.f32 %v237, %v238
    %v242 = vadd.f32 %v241, %v239
    %v243 = vadd.f32 %v242, %v240
    %244 = vadd.xlane.f32.xlu0 %v243
    %v245 = vpop.xlane.xlu0 %244
    %v246 = vadd.f32 %v236, %v245
    %247 = vst.msk [vmem:[%s4] sm:$0xff] %vm234, %v246
    // Predicated region
    $region22: #{tpu_custom_call.1} parent=1 // pred_check
      _
    $region23: #{tpu_custom_call.1} parent=1 // pred_check_branch
      %249 = sbr.rel (0) target = $region25
    $region24: #{tpu_custom_call.1} parent=1 // pred_region
      %s251 = ssub.s32 256, 256
      %252 = vsyncadd [#allocation4], %s251
      %s254 = sshll.u32 [#allocation7], 4
      %s255 = int_to_ptr.vmem [resolvable:$true] %s254
      %257 = dma.vmem_to_hbm [thread:$0]  %s255, 256, %s2, [#allocation4]
    $region25: #{tpu_custom_call.1} parent=1 // pred_fallthru
      _
    // Predicated region
    $region26: #{tpu_custom_call.1} parent=1 // pred_check
      _
    $region27: #{tpu_custom_call.1} parent=1 // pred_check_branch
      %259 = sbr.rel (0) target = $region29
    $region28: #{tpu_custom_call.1} parent=1 // pred_region
      _
    $region29: #{tpu_custom_call.1} parent=1 // pred_fallthru
      _
    // Predicated region
    $region30: #{tpu_custom_call.1} parent=1 // pred_check
      _
    $region31: #{tpu_custom_call.1} parent=1 // pred_check_branch
      %261 = sbr.rel (0) target = $region33
    $region32: #{tpu_custom_call.1} parent=1 // pred_region
      _
    $region33: #{tpu_custom_call.1} parent=1 // pred_fallthru
      _
    // Predicated region
    $region34: #{tpu_custom_call.1} parent=1 // pred_check
      _
    $region35: #{tpu_custom_call.1} parent=1 // pred_check_branch
      %263 = sbr.rel (0) target = $region37
    $region36: #{tpu_custom_call.1} parent=1 // pred_region
      %264 = dma.done [#allocation4], 256
    $region37: #{tpu_custom_call.1} parent=1 // pred_fallthru
      _
    // Predicated region
    $region38: #{tpu_custom_call.1} parent=1 // pred_check
      _
    $region39: #{tpu_custom_call.1} parent=1 // pred_check_branch
      %266 = sbr.rel (0) target = $region41
    $region40: #{tpu_custom_call.1} parent=1 // pred_region
      _
    $region41: #{tpu_custom_call.1} parent=1 // pred_fallthru
      _
    // Predicated region
    $region42: #{tpu_custom_call.1} parent=1 // pred_check
      _
    $region43: #{tpu_custom_call.1} parent=1 // pred_check_branch
      %268 = sbr.rel (0) target = $region45
    $region44: #{tpu_custom_call.1} parent=1 // pred_region
      _
    $region45: #{tpu_custom_call.1} parent=1 // pred_fallthru
      _
    %269 = vsyncpa [#allocation3], 1
    %270 = vsyncpa [#allocation6], 1
    %271 = vsyncpa [#allocation4], 1

</llo_original>
